<compile_context>
chip_gen: v7x
topology: tpu7x:2x2x1
jax: 0.10.0
libtpu: 0.0.40
codegen_flags: <defaults>
</compile_context>

<pallas_src>
import functools

import numpy as np
import jax
import jax.numpy as jnp
from jax import lax
from jax.experimental import pallas as pl
from jax.experimental.pallas import tpu as pltpu


def _conv_block_kernel(x_ref, w1_ref, b1_ref, w2_ref, b2_ref, o_ref,
                       xpad_ref, ypad_ref, *, H, W, Cout):
    """One image per grid step; all values are lane-dense (H, W*C) rows."""
    cdt = x_ref.dtype                        # MXU operand dtype (f32 or bf16)

    def conv3x3(pad_ref, w_ref, b_ref):
        # pad_ref: (H+2, W*Cin_l) row-padded rows; w_ref: (3, W*Cin_l, W*Cout)
        # block-Toeplitz weights (kw taps + W-axis zero padding folded in).
        acc = jnp.dot(pad_ref[0:H, :], w_ref[0],
                      preferred_element_type=jnp.float32)
        acc = acc + jnp.dot(pad_ref[1:H + 1, :], w_ref[1],
                            preferred_element_type=jnp.float32)
        acc = acc + jnp.dot(pad_ref[2:H + 2, :], w_ref[2],
                            preferred_element_type=jnp.float32)
        acc = acc + b_ref[...].astype(jnp.float32)          # folded conv+BN bias
        return jnp.maximum(acc, 0.0)                         # (H, W*Cout) f32

    # ---- conv1 (+ folded BN1) + ReLU --------------------------------------
    xpad_ref[...] = jnp.zeros_like(xpad_ref)                 # zero H-axis border
    xpad_ref[1:H + 1, :] = x_ref[0]                          # single aligned-lane store
    y = conv3x3(xpad_ref, w1_ref, b1_ref)

    # ---- conv2 (+ folded BN2) + ReLU: intermediate stays in VMEM ----------
    ypad_ref[...] = jnp.zeros_like(ypad_ref)
    ypad_ref[1:H + 1, :] = y.astype(cdt)
    z = conv3x3(ypad_ref, w2_ref, b2_ref)

    # lane-dense (H, W*Cout) = (16, 128) unmasked store
    o_ref[0] = z.astype(o_ref.dtype)


def _fold_bn_build_toeplitz(w_oihw, bias, gamma, beta, mean, var, W, eps=1e-5):
    """Fold eval-mode BatchNorm2d into the 3x3 conv and build per-kh
    row-Toeplitz MXU weights (host-side, one time).

    Returns T (3, W*Cin, W*Cout) and b (1, W*Cout) such that, per image row h,
        conv_bn(x)[h] = sum_kh  x_rows[h + kh - 1] @ T[kh]  +  b
    with out-of-range rows treated as zero (handled in-kernel by row padding);
    the kw taps and W-axis zero padding are encoded in T's block structure.
    """
    w = np.asarray(w_oihw, np.float32)                       # (Cout, Cin, 3, 3)
    scale = np.asarray(gamma, np.float32) / np.sqrt(np.asarray(var, np.float32) + eps)
    b_eff = (np.asarray(bias, np.float32) - np.asarray(mean, np.float32)) * scale \
        + np.asarray(beta, np.float32)                       # (Cout,)
    cout, cin = w.shape[0], w.shape[1]
    w_tap = np.transpose(w, (2, 3, 1, 0)) * scale[None, None, None, :]  # (3,3,Cin,Cout)

    T = np.zeros((3, W * cin, W * cout), np.float32)
    for kh in range(3):
        for kw in range(3):
            for wo in range(W):
                wi = wo + kw - 1                             # input column of this tap
                if 0 <= wi < W:                              # W-axis "same" padding folded in
                    T[kh, wi * cin:(wi + 1) * cin,
                      wo * cout:(wo + 1) * cout] = w_tap[kh, kw]
    b_row = np.tile(b_eff, W)[None, :]                       # (1, W*Cout), lane-dense
    return jnp.asarray(T), jnp.asarray(b_row)


def conv_block_forward(x_nchw, w1_toe, b1_row, w2_toe, b2_row):
    """x_nchw: (N, Cin, H, W); weights/biases already BN-folded (Toeplitz form)."""
    N, Cin, H, W = x_nchw.shape
    Cout = w2_toe.shape[-1] // W
    dt = x_nchw.dtype

    # NCHW -> NHWC -> lane-dense rows (N, H, W*Cin); the reshape is free.
    x_rows = jnp.transpose(x_nchw, (0, 2, 3, 1)).reshape(N, H, W * Cin)

    kernel = functools.partial(_conv_block_kernel, H=H, W=W, Cout=Cout)
    out = pl.pallas_call(
        kernel,
        out_shape=jax.ShapeDtypeStruct((N, H, W * Cout), dt),
        grid=(N,),
        in_specs=[
            pl.BlockSpec((1, H, W * Cin), lambda n: (n, 0, 0)),           # x rows
            pl.BlockSpec((3, W * Cin, W * Cout), lambda n: (0, 0, 0)),    # conv1+BN1 Toeplitz
            pl.BlockSpec((1, W * Cout), lambda n: (0, 0)),                # folded bias1
            pl.BlockSpec((3, W * Cout, W * Cout), lambda n: (0, 0, 0)),   # conv2+BN2 Toeplitz
            pl.BlockSpec((1, W * Cout), lambda n: (0, 0)),                # folded bias2
        ],
        out_specs=pl.BlockSpec((1, H, W * Cout), lambda n: (n, 0, 0)),
        scratch_shapes=[
            pltpu.VMEM((H + 2, W * Cin), dt),     # row-padded conv1 input
            pltpu.VMEM((H + 2, W * Cout), dt),    # row-padded intermediate
        ],
        compiler_params=pltpu.CompilerParams(
            dimension_semantics=("parallel",)),
    )(x_rows, w1_toe.astype(dt), b1_row, w2_toe.astype(dt), b2_row)

    # (N, H, W*Cout) -> NHWC -> NCHW (reshape free; one transpose per call).
    return jnp.transpose(out.reshape(N, H, W, Cout), (0, 3, 1, 2))


def reference_conv_block(x, w1, b1, g1, be1, m1, v1, w2, b2, g2, be2, m2, v2,
                         eps=1e-5):
    """Pure-JAX reference: Conv -> BN(eval) -> ReLU, twice (NCHW / OIHW)."""
    def conv(xx, w, b):
        y = lax.conv_general_dilated(
            xx, w, window_strides=(1, 1), padding="SAME",
            dimension_numbers=("NCHW", "OIHW", "NCHW"),
            precision=lax.Precision.HIGHEST)
        return y + b[None, :, None, None]

    def bn(y, g, be, m, v):
        s = (g / jnp.sqrt(v + eps))[None, :, None, None]
        return (y - m[None, :, None, None]) * s + be[None, :, None, None]

    y = jnp.maximum(bn(conv(x, w1, b1), g1, be1, m1, v1), 0.0)
    return jnp.maximum(bn(conv(y, w2, b2), g2, be2, m2, v2), 0.0)


if __name__ == "__main__":
    # Small shapes consistent with ConvBlock: batch=2, in_channels=4,
    # out_channels=8, spatial 16x16 (W*Cout = 128 -> lane-dense output rows).
    N, CIN, COUT, H, W = 2, 4, 8, 16, 16

    keys = jax.random.split(jax.random.PRNGKey(0), 13)
    x = jax.random.normal(keys[0], (N, CIN, H, W), jnp.float32)

    # PyTorch-layout parameters (eval-mode BN with non-trivial running stats so
    # the BN fold is actually exercised).
    w1 = jax.random.normal(keys[1], (COUT, CIN, 3, 3), jnp.float32) / (CIN * 9) ** 0.5
    b1 = 0.1 * jax.random.normal(keys[2], (COUT,), jnp.float32)
    g1 = 1.0 + 0.1 * jax.random.normal(keys[3], (COUT,), jnp.float32)
    be1 = 0.1 * jax.random.normal(keys[4], (COUT,), jnp.float32)
    m1 = 0.1 * jax.random.normal(keys[5], (COUT,), jnp.float32)
    v1 = jnp.abs(1.0 + 0.1 * jax.random.normal(keys[6], (COUT,), jnp.float32))

    w2 = jax.random.normal(keys[7], (COUT, COUT, 3, 3), jnp.float32) / (COUT * 9) ** 0.5
    b2 = 0.1 * jax.random.normal(keys[8], (COUT,), jnp.float32)
    g2 = 1.0 + 0.1 * jax.random.normal(keys[9], (COUT,), jnp.float32)
    be2 = 0.1 * jax.random.normal(keys[10], (COUT,), jnp.float32)
    m2 = 0.1 * jax.random.normal(keys[11], (COUT,), jnp.float32)
    v2 = jnp.abs(1.0 + 0.1 * jax.random.normal(keys[12], (COUT,), jnp.float32))

    # Fold BN (eval mode) + build row-Toeplitz MXU weights host-side (one time).
    w1e, b1e = _fold_bn_build_toeplitz(w1, b1, g1, be1, m1, v1, W)
    w2e, b2e = _fold_bn_build_toeplitz(w2, b2, g2, be2, m2, v2, W)

    out = conv_block_forward(x, w1e, b1e, w2e, b2e)
    out = jax.block_until_ready(out)

    assert out.shape == (N, COUT, H, W)
    assert bool(jnp.all(jnp.isfinite(out)))

    # Correctness check against a pure-JAX reference of the original module.
    ref = reference_conv_block(x, w1, b1, g1, be1, m1, v1, w2, b2, g2, be2, m2, v2)
    err = float(jnp.max(jnp.abs(out - ref)) / (jnp.max(jnp.abs(ref)) + 1e-6))
    # Reference runs at HIGHEST precision; kernel MXU matmuls run at default
    # precision with f32 accumulation, hence the modest tolerance.
    assert err < 2e-2, f"kernel/reference mismatch: normalized max err = {err:.3e}"
    print("KERNEL_OK")
</pallas_src>

<mosaic_0001>
module attributes {stable_mosaic.version = 11 : i64} {
  func.func @_conv_block_kernel(%arg0: i32, %arg1: memref<1x16x64xf32, #tpu.memory_space<vmem>>, %arg2: memref<3x64x128xf32, #tpu.memory_space<vmem>>, %arg3: memref<1x128xf32, #tpu.memory_space<vmem>>, %arg4: memref<3x128x128xf32, #tpu.memory_space<vmem>>, %arg5: memref<1x128xf32, #tpu.memory_space<vmem>>, %arg6: memref<1x16x128xf32, #tpu.memory_space<vmem>>, %arg7: memref<18x64xf32, #tpu.memory_space<vmem>>, %arg8: memref<18x128xf32, #tpu.memory_space<vmem>>) attributes {dimension_semantics = [#tpu.dimension_semantics<parallel>], iteration_bounds = array<i64: 2>, scalar_prefetch = 0 : i64, scratch_operands = 2 : i64, tpu.core_type = #tpu.core_type<tc>, window_params = [{transform_indices = @transform_0, window_bounds = array<i64: 1, 16, 64>}, {pipeline_mode = #tpu.pipeline_mode<synchronous>, transform_indices = @transform_1, window_bounds = array<i64: 3, 64, 128>}, {pipeline_mode = #tpu.pipeline_mode<synchronous>, transform_indices = @transform_2, window_bounds = array<i64: 1, 128>}, {pipeline_mode = #tpu.pipeline_mode<synchronous>, transform_indices = @transform_3, window_bounds = array<i64: 3, 128, 128>}, {pipeline_mode = #tpu.pipeline_mode<synchronous>, transform_indices = @transform_4, window_bounds = array<i64: 1, 128>}, {transform_indices = @transform_5, window_bounds = array<i64: 1, 16, 128>}]} {
    %cst = arith.constant 0.000000e+00 : f32
    %0 = vector.broadcast %cst : f32 to vector<18x64xf32>
    %c0 = arith.constant 0 : index
    %c0_0 = arith.constant 0 : index
    %1 = vector.load %arg7[%c0, %c0_0] : memref<18x64xf32, #tpu.memory_space<vmem>>, vector<18x64xf32>
    tpu.vector_store %arg7[%c0, %c0_0], %0 {strides = array<i32>} : memref<18x64xf32, #tpu.memory_space<vmem>>, vector<18x64xf32>,
    %c0_1 = arith.constant 0 : index
    %c0_2 = arith.constant 0 : index
    %c0_3 = arith.constant 0 : index
    %2 = vector.load %arg1[%c0_1, %c0_2, %c0_3] : memref<1x16x64xf32, #tpu.memory_space<vmem>>, vector<1x16x64xf32>
    %3 = vector.shape_cast %2 : vector<1x16x64xf32> to vector<16x64xf32>
    %c1 = arith.constant 1 : index
    %c0_4 = arith.constant 0 : index
    %4 = vector.load %arg7[%c1, %c0_4] : memref<18x64xf32, #tpu.memory_space<vmem>>, vector<16x64xf32>
    tpu.vector_store %arg7[%c1, %c0_4], %3 {strides = array<i32>} : memref<18x64xf32, #tpu.memory_space<vmem>>, vector<16x64xf32>,
    %c0_5 = arith.constant 0 : index
    %c0_6 = arith.constant 0 : index
    %5 = vector.load %arg7[%c0_5, %c0_6] : memref<18x64xf32, #tpu.memory_space<vmem>>, vector<16x64xf32>
    %c0_7 = arith.constant 0 : index
    %c0_8 = arith.constant 0 : index
    %c0_9 = arith.constant 0 : index
    %6 = vector.load %arg2[%c0_7, %c0_8, %c0_9] : memref<3x64x128xf32, #tpu.memory_space<vmem>>, vector<1x64x128xf32>
    %7 = vector.shape_cast %6 : vector<1x64x128xf32> to vector<64x128xf32>
    %cst_10 = arith.constant dense<0.000000e+00> : vector<16x128xf32>
    %8 = tpu.matmul %5, %7, %cst_10 {dimension_numbers = #tpu.dot_dimension_numbers<[1], [0], [0], [1], [0, 0, 1, 1], [], []>} : vector<16x64xf32>, vector<64x128xf32>, vector<16x128xf32> -> vector<16x128xf32>
    %c1_11 = arith.constant 1 : index
    %c0_12 = arith.constant 0 : index
    %9 = vector.load %arg7[%c1_11, %c0_12] : memref<18x64xf32, #tpu.memory_space<vmem>>, vector<16x64xf32>
    %c1_13 = arith.constant 1 : index
    %c0_14 = arith.constant 0 : index
    %c0_15 = arith.constant 0 : index
    %10 = vector.load %arg2[%c1_13, %c0_14, %c0_15] : memref<3x64x128xf32, #tpu.memory_space<vmem>>, vector<1x64x128xf32>
    %11 = vector.shape_cast %10 : vector<1x64x128xf32> to vector<64x128xf32>
    %cst_16 = arith.constant dense<0.000000e+00> : vector<16x128xf32>
    %12 = tpu.matmul %9, %11, %cst_16 {dimension_numbers = #tpu.dot_dimension_numbers<[1], [0], [0], [1], [0, 0, 1, 1], [], []>} : vector<16x64xf32>, vector<64x128xf32>, vector<16x128xf32> -> vector<16x128xf32>
    %13 = arith.addf %8, %12 : vector<16x128xf32>
    %c2 = arith.constant 2 : index
    %c0_17 = arith.constant 0 : index
    %14 = vector.load %arg7[%c2, %c0_17] : memref<18x64xf32, #tpu.memory_space<vmem>>, vector<16x64xf32>
    %c2_18 = arith.constant 2 : index
    %c0_19 = arith.constant 0 : index
    %c0_20 = arith.constant 0 : index
    %15 = vector.load %arg2[%c2_18, %c0_19, %c0_20] : memref<3x64x128xf32, #tpu.memory_space<vmem>>, vector<1x64x128xf32>
    %16 = vector.shape_cast %15 : vector<1x64x128xf32> to vector<64x128xf32>
    %cst_21 = arith.constant dense<0.000000e+00> : vector<16x128xf32>
    %17 = tpu.matmul %14, %16, %cst_21 {dimension_numbers = #tpu.dot_dimension_numbers<[1], [0], [0], [1], [0, 0, 1, 1], [], []>} : vector<16x64xf32>, vector<64x128xf32>, vector<16x128xf32> -> vector<16x128xf32>
    %18 = arith.addf %13, %17 : vector<16x128xf32>
    %c0_22 = arith.constant 0 : index
    %c0_23 = arith.constant 0 : index
    %19 = vector.load %arg3[%c0_22, %c0_23] : memref<1x128xf32, #tpu.memory_space<vmem>>, vector<1x128xf32>
    %20 = vector.broadcast %19 : vector<1x128xf32> to vector<16x128xf32>
    %21 = arith.addf %18, %20 : vector<16x128xf32>
    %cst_24 = arith.constant 0.000000e+00 : f32
    %22 = vector.broadcast %cst_24 : f32 to vector<16x128xf32>
    %23 = arith.maximumf %21, %22 : vector<16x128xf32>
    %cst_25 = arith.constant 0.000000e+00 : f32
    %24 = vector.broadcast %cst_25 : f32 to vector<18x128xf32>
    %c0_26 = arith.constant 0 : index
    %c0_27 = arith.constant 0 : index
    %25 = vector.load %arg8[%c0_26, %c0_27] : memref<18x128xf32, #tpu.memory_space<vmem>>, vector<18x128xf32>
    tpu.vector_store %arg8[%c0_26, %c0_27], %24 {strides = array<i32>} : memref<18x128xf32, #tpu.memory_space<vmem>>, vector<18x128xf32>,
    %c1_28 = arith.constant 1 : index
    %c0_29 = arith.constant 0 : index
    %26 = vector.load %arg8[%c1_28, %c0_29] : memref<18x128xf32, #tpu.memory_space<vmem>>, vector<16x128xf32>
    tpu.vector_store %arg8[%c1_28, %c0_29], %23 {strides = array<i32>} : memref<18x128xf32, #tpu.memory_space<vmem>>, vector<16x128xf32>,
    %c0_30 = arith.constant 0 : index
    %c0_31 = arith.constant 0 : index
    %27 = vector.load %arg8[%c0_30, %c0_31] : memref<18x128xf32, #tpu.memory_space<vmem>>, vector<16x128xf32>
    %c0_32 = arith.constant 0 : index
    %c0_33 = arith.constant 0 : index
    %c0_34 = arith.constant 0 : index
    %28 = vector.load %arg4[%c0_32, %c0_33, %c0_34] : memref<3x128x128xf32, #tpu.memory_space<vmem>>, vector<1x128x128xf32>
    %29 = vector.shape_cast %28 : vector<1x128x128xf32> to vector<128x128xf32>
    %cst_35 = arith.constant dense<0.000000e+00> : vector<16x128xf32>
    %30 = tpu.matmul %27, %29, %cst_35 {dimension_numbers = #tpu.dot_dimension_numbers<[1], [0], [0], [1], [0, 0, 1, 1], [], []>} : vector<16x128xf32>, vector<128x128xf32>, vector<16x128xf32> -> vector<16x128xf32>
    %c1_36 = arith.constant 1 : index
    %c0_37 = arith.constant 0 : index
    %31 = vector.load %arg8[%c1_36, %c0_37] : memref<18x128xf32, #tpu.memory_space<vmem>>, vector<16x128xf32>
    %c1_38 = arith.constant 1 : index
    %c0_39 = arith.constant 0 : index
    %c0_40 = arith.constant 0 : index
    %32 = vector.load %arg4[%c1_38, %c0_39, %c0_40] : memref<3x128x128xf32, #tpu.memory_space<vmem>>, vector<1x128x128xf32>
    %33 = vector.shape_cast %32 : vector<1x128x128xf32> to vector<128x128xf32>
    %cst_41 = arith.constant dense<0.000000e+00> : vector<16x128xf32>
    %34 = tpu.matmul %31, %33, %cst_41 {dimension_numbers = #tpu.dot_dimension_numbers<[1], [0], [0], [1], [0, 0, 1, 1], [], []>} : vector<16x128xf32>, vector<128x128xf32>, vector<16x128xf32> -> vector<16x128xf32>
    %35 = arith.addf %30, %34 : vector<16x128xf32>
    %c2_42 = arith.constant 2 : index
    %c0_43 = arith.constant 0 : index
    %36 = vector.load %arg8[%c2_42, %c0_43] : memref<18x128xf32, #tpu.memory_space<vmem>>, vector<16x128xf32>
    %c2_44 = arith.constant 2 : index
    %c0_45 = arith.constant 0 : index
    %c0_46 = arith.constant 0 : index
    %37 = vector.load %arg4[%c2_44, %c0_45, %c0_46] : memref<3x128x128xf32, #tpu.memory_space<vmem>>, vector<1x128x128xf32>
    %38 = vector.shape_cast %37 : vector<1x128x128xf32> to vector<128x128xf32>
    %cst_47 = arith.constant dense<0.000000e+00> : vector<16x128xf32>
    %39 = tpu.matmul %36, %38, %cst_47 {dimension_numbers = #tpu.dot_dimension_numbers<[1], [0], [0], [1], [0, 0, 1, 1], [], []>} : vector<16x128xf32>, vector<128x128xf32>, vector<16x128xf32> -> vector<16x128xf32>
    %40 = arith.addf %35, %39 : vector<16x128xf32>
    %c0_48 = arith.constant 0 : index
    %c0_49 = arith.constant 0 : index
    %41 = vector.load %arg5[%c0_48, %c0_49] : memref<1x128xf32, #tpu.memory_space<vmem>>, vector<1x128xf32>
    %42 = vector.broadcast %41 : vector<1x128xf32> to vector<16x128xf32>
    %43 = arith.addf %40, %42 : vector<16x128xf32>
    %cst_50 = arith.constant 0.000000e+00 : f32
    %44 = vector.broadcast %cst_50 : f32 to vector<16x128xf32>
    %45 = arith.maximumf %43, %44 : vector<16x128xf32>
    %c0_51 = arith.constant 0 : index
    %c0_52 = arith.constant 0 : index
    %c0_53 = arith.constant 0 : index
    %46 = vector.load %arg6[%c0_51, %c0_52, %c0_53] : memref<1x16x128xf32, #tpu.memory_space<vmem>>, vector<1x16x128xf32>
    %47 = vector.shape_cast %46 : vector<1x16x128xf32> to vector<16x128xf32>
    %48 = vector.shape_cast %45 : vector<16x128xf32> to vector<1x16x128xf32>
    tpu.vector_store %arg6[%c0_51, %c0_52, %c0_53], %48 {strides = array<i32>} : memref<1x16x128xf32, #tpu.memory_space<vmem>>, vector<1x16x128xf32>,
    return
  }
  func.func @transform_0(%arg0: i32) -> (i32, i32, i32) {
    %c0_i32 = arith.constant 0 : i32
    %c0_i32_0 = arith.constant 0 : i32
    %c0_i32_1 = arith.constant 0 : i32
    return %arg0, %c0_i32, %c0_i32_0 : i32, i32, i32
  }
  func.func @transform_1(%arg0: i32) -> (i32, i32, i32) {
    %c0_i32 = arith.constant 0 : i32
    %c0_i32_0 = arith.constant 0 : i32
    %c0_i32_1 = arith.constant 0 : i32
    %c0_i32_2 = arith.constant 0 : i32
    return %c0_i32, %c0_i32_0, %c0_i32_1 : i32, i32, i32
  }
  func.func @transform_2(%arg0: i32) -> (i32, i32) {
    %c0_i32 = arith.constant 0 : i32
    %c0_i32_0 = arith.constant 0 : i32
    %c0_i32_1 = arith.constant 0 : i32
    return %c0_i32, %c0_i32_0 : i32, i32
  }
  func.func @transform_3(%arg0: i32) -> (i32, i32, i32) {
    %c0_i32 = arith.constant 0 : i32
    %c0_i32_0 = arith.constant 0 : i32
    %c0_i32_1 = arith.constant 0 : i32
    %c0_i32_2 = arith.constant 0 : i32
    return %c0_i32, %c0_i32_0, %c0_i32_1 : i32, i32, i32
  }
  func.func @transform_4(%arg0: i32) -> (i32, i32) {
    %c0_i32 = arith.constant 0 : i32
    %c0_i32_0 = arith.constant 0 : i32
    %c0_i32_1 = arith.constant 0 : i32
    return %c0_i32, %c0_i32_0 : i32, i32
  }
  func.func @transform_5(%arg0: i32) -> (i32, i32, i32) {
    %c0_i32 = arith.constant 0 : i32
    %c0_i32_0 = arith.constant 0 : i32
    %c0_i32_1 = arith.constant 0 : i32
    return %arg0, %c0_i32, %c0_i32_0 : i32, i32, i32
  }
}

</mosaic_0001>

<llo_original>
// kernel: tpu_custom_call.1
$region0: #{tpu_custom_call.1}
  #allocation0 [shape = 'u32[]', space=smem, size = 0x4, offset = 0x4, fixed_abs, tag = 'smem constant byte address 0x4 - core index']
  #allocation1 [shape = 'u32[144,128]{1,0:T(1,128)}', space=vmem, size = 0x12000, scoped, tag = 'internal scratch']
  #allocation2 [shape = 'f32[18,64]{1,0:T(8,128)}', space=vmem, size = 0x3000, scoped, tag = 'scratch operand']
  #allocation3 [shape = 'f32[18,128]{1,0:T(8,128)}', space=vmem, size = 0x3000, scoped, tag = 'scratch operand']
  %s0 = inlined_call_operand.hbm [shape: f32[2,16,64], index: 0, kind: input, shape index: {}]
  %s1 = inlined_call_operand.hbm [shape: f32[3,64,128], index: 1, kind: input, shape index: {}]
  %s2 = inlined_call_operand.vmem [shape: f32[1,128], index: 2, kind: input, shape index: {}]
  %s3 = inlined_call_operand.hbm [shape: f32[3,128,128], index: 3, kind: input, shape index: {}]
  %s4 = inlined_call_operand.vmem [shape: f32[1,128], index: 4, kind: input, shape index: {}]
  %s5 = inlined_call_operand.hbm [shape: f32[2,16,128], index: 5, kind: output, shape index: {}]
  %s6 = sld [smem:[#allocation0]]
  $region65: #{tpu_custom_call.1} parent=0
    _
  %s8 = ssub.s32 1, %s6
  %s9 = scalar_select 0, %s8, %s6
  $region1: #{tpu_custom_call.1} parent=0
    #allocation4 [shape = 'u8[16384]{0}', space=vmem, size = 0x4000, scoped, tag = 'input window, operand 0']
    #allocation5 [shape = 's32[2]{0}', space=sflag, size = 0x8, scoped, tag = 'scoped memory for tpu_custom_call.1']
    #allocation6 [shape = 's32[2]{0}', space=sflag, size = 0x8, scoped, tag = 'scoped memory for tpu_custom_call.1']
    #allocation7 [shape = 'u8[98304]{0}', space=vmem, size = 0x18000, scoped, tag = 'input window, operand 1, single buffered']
    #allocation8 [shape = 's32[1]{0}', space=sflag, size = 0x4, scoped, tag = 'scoped memory for tpu_custom_call.1']
    #allocation9 [shape = 'u8[196608]{0}', space=vmem, size = 0x30000, scoped, tag = 'input window, operand 3, single buffered']
    #allocation10 [shape = 'u8[16384]{0}', space=vmem, size = 0x4000, scoped, tag = 'output window, operand 0']
    %10 = vsyncpa [#allocation5], 0
    %s11 = scalar_lea.sflag [#allocation5], 1
    %12 = vsyncpa %s11, 0
    %13 = vsyncpa [#allocation8], 0
    %14 = vsyncpa [#allocation6], 0
    %s15 = scalar_lea.sflag [#allocation6], 1
    %16 = vsyncpa %s15, 0
    loop: start=0, step=1, limit=4
    $region2: #{tpu_custom_call.1} parent=1 // loop_pre_header
      _
    $region3: #{tpu_custom_call.1} parent=1 // loop_header
      %s18 = sphi 0, %s22
      %p19 = scmp.ge.s32.totalorder %s18, 4
      %s28 = sphi 0, %s30
      %s31 = sphi 0, %s28
      %s32 = sphi 0, %s31
      %s48 = sphi 0, %s32
      %s52 = sphi 0, %s52
      %s54 = sphi 0, %s52
      %s55 = sphi 0, %s54
      %s69 = sphi 0, %s55
      %s73 = sphi 0, %s73
      %s75 = sphi 0, %s73
      %s76 = sphi 0, %s75
      %s90 = sphi 0, %s76
      %s94 = sphi 0, %s94
      %s96 = sphi 0, %s94
      %s97 = sphi 0, %s96
      %s111 = sphi 0, %s97
      %s115 = sphi 0, %s115
      %s117 = sphi 0, %s115
      %s118 = sphi 0, %s117
      %s132 = sphi 0, %s118
      %s138 = sphi 0, %s140
      %s141 = sphi 0, %s138
      %s142 = sphi 0, %s141
      %s158 = sphi 0, %s142
    $region4: #{tpu_custom_call.1} parent=1 // loop_header_branch
      %21 = sbr.rel (%p19) target = $region8
    $region5: #{tpu_custom_call.1} parent=1 // loop_body
      %s23 = ssub.s32 %s18, 1
      %s24 = ssub.s32 %s18, 2
      %s25 = sadd.s32 %s18, 1
      %s26 = ssub.s32 %s18, %s25
      %p27 = scmp.eq.s32.totalorder %s26, 0
      %s29 = sadd.s32 %s28, 1
      %s30 = scalar_select %p27, %s28, %s29
      %p33 = pneg %p27
      %p34 = scmp.eq.s32.totalorder %s18, 1
      %p35 = por %p33, %p34
      %p36 = scmp.ne.s32.totalorder %s28, %s31
      %p37 = scmp.eq.s32.totalorder %s18, 0
      %p38 = por %p36, %p37
      %p39 = scmp.ne.s32.totalorder %s28, %s31
      %p40 = scmp.eq.s32.totalorder %s23, 1
      %p41 = por %p39, %p40
      %p42 = scmp.ne.s32.totalorder %s31, %s32
      %p43 = scmp.eq.s32.totalorder %s23, 0
      %p44 = por %p42, %p43
      %p45 = scmp.ne.s32.totalorder %s31, %s32
      %p46 = scmp.eq.s32.totalorder %s24, 1
      %p47 = por %p45, %p46
      %p49 = scmp.ne.s32.totalorder %s32, %s48
      %p50 = scmp.eq.s32.totalorder %s24, 0
      %p51 = por %p49, %p50
      %s53 = sadd.s32 %s52, 1
      %p56 = scmp.eq.s32.totalorder %s18, 1
      %p57 = scmp.ne.s32.totalorder %s52, %s54
      %p58 = scmp.eq.s32.totalorder %s18, 0
      %p59 = por %p57, %p58
      %p60 = scmp.ne.s32.totalorder %s52, %s54
      %p61 = scmp.eq.s32.totalorder %s23, 1
      %p62 = por %p60, %p61
      %p63 = scmp.ne.s32.totalorder %s54, %s55
      %p64 = scmp.eq.s32.totalorder %s23, 0
      %p65 = por %p63, %p64
      %p66 = scmp.ne.s32.totalorder %s54, %s55
      %p67 = scmp.eq.s32.totalorder %s24, 1
      %p68 = por %p66, %p67
      %p70 = scmp.ne.s32.totalorder %s55, %s69
      %p71 = scmp.eq.s32.totalorder %s24, 0
      %p72 = por %p70, %p71
      %s74 = sadd.s32 %s73, 1
      %p77 = scmp.eq.s32.totalorder %s18, 1
      %p78 = scmp.ne.s32.totalorder %s73, %s75
      %p79 = scmp.eq.s32.totalorder %s18, 0
      %p80 = por %p78, %p79
      %p81 = scmp.ne.s32.totalorder %s73, %s75
      %p82 = scmp.eq.s32.totalorder %s23, 1
      %p83 = por %p81, %p82
      %p84 = scmp.ne.s32.totalorder %s75, %s76
      %p85 = scmp.eq.s32.totalorder %s23, 0
      %p86 = por %p84, %p85
      %p87 = scmp.ne.s32.totalorder %s75, %s76
      %p88 = scmp.eq.s32.totalorder %s24, 1
      %p89 = por %p87, %p88
      %p91 = scmp.ne.s32.totalorder %s76, %s90
      %p92 = scmp.eq.s32.totalorder %s24, 0
      %p93 = por %p91, %p92
      %s95 = sadd.s32 %s94, 1
      %p98 = scmp.eq.s32.totalorder %s18, 1
      %p99 = scmp.ne.s32.totalorder %s94, %s96
      %p100 = scmp.eq.s32.totalorder %s18, 0
      %p101 = por %p99, %p100
      %p102 = scmp.ne.s32.totalorder %s94, %s96
      %p103 = scmp.eq.s32.totalorder %s23, 1
      %p104 = por %p102, %p103
      %p105 = scmp.ne.s32.totalorder %s96, %s97
      %p106 = scmp.eq.s32.totalorder %s23, 0
      %p107 = por %p105, %p106
      %p108 = scmp.ne.s32.totalorder %s96, %s97
      %p109 = scmp.eq.s32.totalorder %s24, 1
      %p110 = por %p108, %p109
      %p112 = scmp.ne.s32.totalorder %s97, %s111
      %p113 = scmp.eq.s32.totalorder %s24, 0
      %p114 = por %p112, %p113
      %s116 = sadd.s32 %s115, 1
      %p119 = scmp.eq.s32.totalorder %s18, 1
      %p120 = scmp.ne.s32.totalorder %s115, %s117
      %p121 = scmp.eq.s32.totalorder %s18, 0
      %p122 = por %p120, %p121
      %p123 = scmp.ne.s32.totalorder %s115, %s117
      %p124 = scmp.eq.s32.totalorder %s23, 1
      %p125 = por %p123, %p124
      %p126 = scmp.ne.s32.totalorder %s117, %s118
      %p127 = scmp.eq.s32.totalorder %s23, 0
      %p128 = por %p126, %p127
      %p129 = scmp.ne.s32.totalorder %s117, %s118
      %p130 = scmp.eq.s32.totalorder %s24, 1
      %p131 = por %p129, %p130
      %p133 = scmp.ne.s32.totalorder %s118, %s132
      %p134 = scmp.eq.s32.totalorder %s24, 0
      %p135 = por %p133, %p134
      %s136 = ssub.s32 %s18, %s25
      %p137 = scmp.eq.s32.totalorder %s136, 0
      %s139 = sadd.s32 %s138, 1
      %s140 = scalar_select %p137, %s138, %s139
      %p143 = pneg %p137
      %p144 = scmp.eq.s32.totalorder %s18, 1
      %p145 = por %p143, %p144
      %p146 = scmp.ne.s32.totalorder %s138, %s141
      %p147 = scmp.eq.s32.totalorder %s18, 0
      %p148 = por %p146, %p147
      %p149 = scmp.ne.s32.totalorder %s138, %s141
      %p150 = scmp.eq.s32.totalorder %s23, 1
      %p151 = por %p149, %p150
      %p152 = scmp.ne.s32.totalorder %s141, %s142
      %p153 = scmp.eq.s32.totalorder %s23, 0
      %p154 = por %p152, %p153
      %p155 = scmp.ne.s32.totalorder %s141, %s142
      %p156 = scmp.eq.s32.totalorder %s24, 1
      %p157 = por %p155, %p156
      %p159 = scmp.ne.s32.totalorder %s142, %s158
      %p160 = scmp.eq.s32.totalorder %s24, 0
      %p161 = por %p159, %p160
      %p162 = scmp.le.s32.totalorder 1, %s18
      %p163 = scmp.lt.s32.totalorder %s18, 3
      %p164 = pnand %p162, %p163
      %p165 = pneg %p164
      // Predicated region
      $region9: #{tpu_custom_call.1} parent=5 // pred_check
        _
      $region10: #{tpu_custom_call.1} parent=5 // pred_check_branch
        %167 = sbr.rel (%p164) target = $region12
      $region11: #{tpu_custom_call.1} parent=5 // pred_region
        %s168 = ssub.s32 %s18, 1
        // Predicated region
        $region13: #{tpu_custom_call.1} parent=11 // pred_check
          %p169 = pneg %p65
        $region14: #{tpu_custom_call.1} parent=11 // pred_check_branch
          %171 = sbr.rel (%p169) target = $region16
        $region15: #{tpu_custom_call.1} parent=11 // pred_region
          %s173 = ssub.s32 3072, 3072
          %174 = vsyncadd [#allocation8], %s173
          %s175 = sshll.u32 [#allocation7], 4
          %s176 = int_to_ptr.vmem [resolvable:$true] %s175
          %181 = dma.hbm_to_vmem [thread:$0]  %s1, 3072, %s176, [#allocation8], 128, 128, 8
        $region16: #{tpu_custom_call.1} parent=11 // pred_fallthru
          _
        // Predicated region
        $region17: #{tpu_custom_call.1} parent=11 // pred_check
          %p182 = pneg %p86
        $region18: #{tpu_custom_call.1} parent=11 // pred_check_branch
          %184 = sbr.rel (%p182) target = $region20
        $region19: #{tpu_custom_call.1} parent=11 // pred_region
          _
        $region20: #{tpu_custom_call.1} parent=11 // pred_fallthru
          _
        // Predicated region
        $region21: #{tpu_custom_call.1} parent=11 // pred_check
          %p185 = pneg %p107
        $region22: #{tpu_custom_call.1} parent=11 // pred_check_branch
          %187 = sbr.rel (%p185) target = $region24
        $region23: #{tpu_custom_call.1} parent=11 // pred_region
          %s189 = ssub.s32 6144, 6144
          %190 = vsyncadd [#allocation8], %s189
          %s191 = sshll.u32 [#allocation9], 4
          %s192 = int_to_ptr.vmem [resolvable:$true] %s191
          %197 = dma.hbm_to_vmem [thread:$0]  %s3, 6144, %s192, [#allocation8], 128, 128, 8
        $region24: #{tpu_custom_call.1} parent=11 // pred_fallthru
          _
        // Predicated region
        $region25: #{tpu_custom_call.1} parent=11 // pred_check
          %p198 = pneg %p128
        $region26: #{tpu_custom_call.1} parent=11 // pred_check_branch
          %200 = sbr.rel (%p198) target = $region28
        $region27: #{tpu_custom_call.1} parent=11 // pred_region
          _
        $region28: #{tpu_custom_call.1} parent=11 // pred_fallthru
          _
      $region12: #{tpu_custom_call.1} parent=5 // pred_fallthru
        _
      %p201 = scmp.lt.s32.totalorder %s18, 2
      // Predicated region
      $region29: #{tpu_custom_call.1} parent=5 // pred_check
        %p202 = pneg %p201
      $region30: #{tpu_custom_call.1} parent=5 // pred_check_branch
        %204 = sbr.rel (%p202) target = $region32
      $region31: #{tpu_custom_call.1} parent=5 // pred_region
        // Predicated region
        $region33: #{tpu_custom_call.1} parent=31 // pred_check
          %p205 = pneg %p38
        $region34: #{tpu_custom_call.1} parent=31 // pred_check_branch
          %207 = sbr.rel (%p205) target = $region36
        $region35: #{tpu_custom_call.1} parent=31 // pred_region
          %s208 = sand.u32 %s28, 1
          %s209 = scalar_lea.sflag [#allocation5], %s208
          %s210 = sand.u32 %s28, 1
          %s211 = smul.addr %s210, 16
          %s212 = scalar_lea.vmem [#allocation4], %s211
          %s214 = ssub.s32 256, 256
          %215 = vsyncadd %s209, %s214
          %s216 = smul.addr %s18, 2
          %s217 = smul.addr %s216, 128
          %s218 = scalar_lea.hbm %s0, %s217
          %s219 = sshll.u32 %s212, 4
          %s220 = int_to_ptr.vmem [resolvable:$true] %s219
          %225 = dma.hbm_to_vmem [thread:$0]  %s218, 256, %s220, %s209, 128, 128, 8
        $region36: #{tpu_custom_call.1} parent=31 // pred_fallthru
          _
      $region32: #{tpu_custom_call.1} parent=5 // pred_fallthru
        _
      %p226 = scmp.le.s32.totalorder 1, %s18
      %p227 = scmp.lt.s32.totalorder %s18, 3
      %p228 = pnand %p226, %p227
      %p229 = pneg %p228
      // Predicated region
      $region37: #{tpu_custom_call.1} parent=5 // pred_check
        _
      $region38: #{tpu_custom_call.1} parent=5 // pred_check_branch
        %231 = sbr.rel (%p228) target = $region40
      $region39: #{tpu_custom_call.1} parent=5 // pred_region
        %s232 = ssub.s32 %s18, 1
        %s233 = sand.u32 %s31, 1
        %s234 = scalar_lea.sflag [#allocation5], %s233
        %s235 = sand.u32 %s31, 1
        %s236 = smul.addr %s235, 16
        %s237 = scalar_lea.vmem [#allocation4], %s236
        // Predicated region
        $region41: #{tpu_custom_call.1} parent=39 // pred_check
          %p238 = pneg %p44
        $region42: #{tpu_custom_call.1} parent=39 // pred_check_branch
          %240 = sbr.rel (%p238) target = $region44
        $region43: #{tpu_custom_call.1} parent=39 // pred_region
          %241 = dma.done %s234, 256
        $region44: #{tpu_custom_call.1} parent=39 // pred_fallthru
          _
        // Predicated region
        $region45: #{tpu_custom_call.1} parent=39 // pred_check
          %p242 = pneg %p65
        $region46: #{tpu_custom_call.1} parent=39 // pred_check_branch
          %244 = sbr.rel (%p242) target = $region48
        $region47: #{tpu_custom_call.1} parent=39 // pred_region
          %245 = dma.done [#allocation8], 3072
        $region48: #{tpu_custom_call.1} parent=39 // pred_fallthru
          _
        // Predicated region
        $region49: #{tpu_custom_call.1} parent=39 // pred_check
          %p246 = pneg %p107
        $region50: #{tpu_custom_call.1} parent=39 // pred_check_branch
          %248 = sbr.rel (%p246) target = $region52
        $region51: #{tpu_custom_call.1} parent=39 // pred_region
          %249 = dma.done [#allocation8], 6144
        $region52: #{tpu_custom_call.1} parent=39 // pred_fallthru
          _
        %s250 = sand.u32 %s31, 1
        %s251 = scalar_lea.sflag [#allocation5], %s250
        %s252 = sand.u32 %s31, 1
        %s253 = smul.addr %s252, 16
        %s254 = scalar_lea.vmem [#allocation4], %s253
        %p255 = pneg %p44
        %p256 = pneg %p41
        %p257 = pneg %p65
        %p258 = pneg %p62
        %p259 = pneg %p86
        %p260 = pneg %p83
        %p261 = pneg %p107
        %p262 = pneg %p104
        %p263 = pneg %p128
        %p264 = pneg %p125
        %p265 = pneg %p154
        %p266 = pneg %p151
        %s267 = sand.u32 %s141, 1
        %s268 = scalar_lea.sflag [#allocation6], %s267
        %s269 = sand.u32 %s141, 1
        %s270 = smul.addr %s269, 16
        %s271 = scalar_lea.vmem [#allocation10], %s270
        %vm272 = vcmask 523264
        %273 = vst.msk [vmem:[#allocation2] sm:$0xff] %vm272, 0.0
        %274 = vst.msk [vmem:[#allocation2 + $0x8] sm:$0xff] %vm272, 0.0
        %vm275 = vcmask 517120
        %276 = vst.msk [vmem:[#allocation2 + $0x10] sm:$0x3] %vm275, 0.0
        %v277 = vld [vmem:[%s237] sm:$0xff]
        %v278 = vld [vmem:[%s237 + $0x8] sm:$0xff]
        %279 = vst.msk [vmem:[#allocation2 + $0x1] sm:$0xff] %vm272, %v277
        %280 = vst.msk [vmem:[#allocation2 + $0x9] sm:$0xff] %vm272, %v278
        %v281 = vld [vmem:[#allocation2] sm:$0xff]
        %v282 = vld [vmem:[#allocation2 + $0x8] sm:$0xff]
        %v283 = vld [vmem:[#allocation7] sm:$0xff]
        %v284 = vld [vmem:[#allocation7 + $0x8] sm:$0xff]
        %v285 = vld [vmem:[#allocation7 + $0x10] sm:$0xff]
        %v286 = vld [vmem:[#allocation7 + $0x18] sm:$0xff]
        %v287 = vld [vmem:[#allocation7 + $0x20] sm:$0xff]
        %v288 = vld [vmem:[#allocation7 + $0x28] sm:$0xff]
        %v289 = vld [vmem:[#allocation7 + $0x30] sm:$0xff]
        %v290 = vld [vmem:[#allocation7 + $0x38] sm:$0xff]
        %v291 = vld [vmem:[#allocation2 + $0x1] sm:$0xff]
        %v292 = vld [vmem:[#allocation2 + $0x9] sm:$0xff]
        %s293 = scalar_lea.vmem [#allocation7], 64
        %v294 = vld [vmem:[%s293] sm:$0xff]
        %v295 = vld [vmem:[%s293 + $0x8] sm:$0xff]
        %v296 = vld [vmem:[%s293 + $0x10] sm:$0xff]
        %v297 = vld [vmem:[%s293 + $0x18] sm:$0xff]
        %v298 = vld [vmem:[%s293 + $0x20] sm:$0xff]
        %v299 = vld [vmem:[%s293 + $0x28] sm:$0xff]
        %v300 = vld [vmem:[%s293 + $0x30] sm:$0xff]
        %v301 = vld [vmem:[%s293 + $0x38] sm:$0xff]
        %v303 = vsel %vm272, %v291, 0
        %v306 = vsel %vm272, %v292, 0
        %308 = vmatprep.subr.mxu0 0.0
        %309 = vmatpush1.msra.mxu0 %v294
        %310 = vmatprep.subr.mxu0 0.0
        %311 = vmatpush1.msra.mxu0 %v295
        %312 = vmatprep.subr.mxu0 0.0
        %313 = vmatpush1.msra.mxu0 %v296
        %314 = vmatprep.subr.mxu0 0.0
        %315 = vmatpush1.msra.mxu0 %v297
        %316 = vmatprep.subr.mxu0 0.0
        %317 = vmatpush1.msra.mxu0 %v298
        %318 = vmatprep.subr.mxu0 0.0
        %319 = vmatpush1.msra.mxu0 %v299
        %320 = vmatprep.subr.mxu0 0.0
        %321 = vmatpush1.msra.mxu0 %v300
        %322 = vmatprep.subr.mxu0 0.0
        %323 = vmatpush1.msra.mxu0 %v301
        %324 = vmatprep.subr.mxu0 0.0
        %325 = vmatpush1.msra.mxu0 0.0
        %326 = vmatprep.subr.mxu0 0.0
        %327 = vmatpush1.msra.mxu0 0.0
        %328 = vmatprep.subr.mxu0 0.0
        %329 = vmatpush1.msra.mxu0 0.0
        %330 = vmatprep.subr.mxu0 0.0
        %331 = vmatpush1.msra.mxu0 0.0
        %332 = vmatprep.subr.mxu0 0.0
        %333 = vmatpush1.msra.mxu0 0.0
        %334 = vmatprep.subr.mxu0 0.0
        %335 = vmatpush1.msra.mxu0 0.0
        %336 = vmatprep.subr.mxu0 0.0
        %337 = vmatpush1.msra.mxu0 0.0
        %338 = vmatprep.subr.mxu0 0.0
        %339 = vmatpush1.msra.mxu0 0.0
        %340 = vmatprep.subr.mxu0 0.0
        %341 = vmatpush1.msra.mxu0 0.0
        %342 = vmatprep.subr.mxu0 0.0
        %343 = vmatpush1.msra.mxu0 0.0
        %344 = vmatprep.subr.mxu0 0.0
        %345 = vmatpush1.msra.mxu0 0.0
        %346 = vmatprep.subr.mxu0 0.0
        %347 = vmatpush1.msra.mxu0 0.0
        %348 = vmatprep.subr.mxu0 0.0
        %349 = vmatpush1.msra.mxu0 0.0
        %350 = vmatprep.subr.mxu0 0.0
        %351 = vmatpush1.msra.mxu0 0.0
        %352 = vmatprep.subr.mxu0 0.0
        %353 = vmatpush1.msra.mxu0 0.0
        %354 = vmatprep.subr.mxu0 0.0
        %355 = vmatpush1.msra.mxu0 0.0
        %356 = vmatprep.subr.mxu0 0.0
        %357 = vmatpush1.msra.mxu0 0.0
        %358 = vmatprep.subr.mxu0 0.0
        %359 = vmatpush1.msra.mxu0 0.0
        %360 = vmatprep.subr.mxu0 0.0
        %361 = vmatpush1.msra.mxu0 0.0
        %362 = vmatprep.subr.mxu0 0.0
        %363 = vmatpush1.msra.mxu0 0.0
        %364 = vmatprep.subr.mxu0 0.0
        %365 = vmatpush1.msra.mxu0 0.0
        %366 = vmatprep.subr.mxu0 0.0
        %367 = vmatpush1.msra.mxu0 0.0
        %368 = vmatprep.subr.mxu0 0.0
        %369 = vmatpush1.msra.mxu0 0.0
        %370 = vmatprep.subr.mxu0 0.0
        %371 = vmatpush1.msra.mxu0 0.0
        %372 = vmatprep.mubr.f32.mxu0 0.0
        %373 = vmatmul.mubr.f32.gmra.mrb[0].mxu0 %v303
        %v374 = vpop.f32.mrb[0].mxu0
        %v375 = vadd.f32 0.0, %v374
        %v376 = vpop.f32.mrb[0].mxu0
        %377 = vmatprep.mubr.f32.mxu0 0.0
        %378 = vmatmul.mubr.f32.gmra.mrb[0].mxu0 %v306
        %v379 = vpop.f32.mrb[0].mxu0
        %v380 = vadd.f32 0.0, %v379
        %v381 = vpop.f32.mrb[0].mxu0
        %382 = vdwg.mxu0
        %v384 = vsel %vm272, %v281, 0
        %v387 = vsel %vm272, %v282, 0
        %389 = vmatprep.subr.mxu0 0.0
        %390 = vmatpush1.msra.mxu0 %v283
        %391 = vmatprep.subr.mxu0 0.0
        %392 = vmatpush1.msra.mxu0 %v284
        %393 = vmatprep.subr.mxu0 0.0
        %394 = vmatpush1.msra.mxu0 %v285
        %395 = vmatprep.subr.mxu0 0.0
        %396 = vmatpush1.msra.mxu0 %v286
        %397 = vmatprep.subr.mxu0 0.0
        %398 = vmatpush1.msra.mxu0 %v287
        %399 = vmatprep.subr.mxu0 0.0
        %400 = vmatpush1.msra.mxu0 %v288
        %401 = vmatprep.subr.mxu0 0.0
        %402 = vmatpush1.msra.mxu0 %v289
        %403 = vmatprep.subr.mxu0 0.0
        %404 = vmatpush1.msra.mxu0 %v290
        %405 = vmatprep.subr.mxu0 0.0
        %406 = vmatpush1.msra.mxu0 0.0
        %407 = vmatprep.subr.mxu0 0.0
        %408 = vmatpush1.msra.mxu0 0.0
        %409 = vmatprep.subr.mxu0 0.0
        %410 = vmatpush1.msra.mxu0 0.0
        %411 = vmatprep.subr.mxu0 0.0
        %412 = vmatpush1.msra.mxu0 0.0
        %413 = vmatprep.subr.mxu0 0.0
        %414 = vmatpush1.msra.mxu0 0.0
        %415 = vmatprep.subr.mxu0 0.0
        %416 = vmatpush1.msra.mxu0 0.0
        %417 = vmatprep.subr.mxu0 0.0
        %418 = vmatpush1.msra.mxu0 0.0
        %419 = vmatprep.subr.mxu0 0.0
        %420 = vmatpush1.msra.mxu0 0.0
        %421 = vmatprep.subr.mxu0 0.0
        %422 = vmatpush1.msra.mxu0 0.0
        %423 = vmatprep.subr.mxu0 0.0
        %424 = vmatpush1.msra.mxu0 0.0
        %425 = vmatprep.subr.mxu0 0.0
        %426 = vmatpush1.msra.mxu0 0.0
        %427 = vmatprep.subr.mxu0 0.0
        %428 = vmatpush1.msra.mxu0 0.0
        %429 = vmatprep.subr.mxu0 0.0
        %430 = vmatpush1.msra.mxu0 0.0
        %431 = vmatprep.subr.mxu0 0.0
        %432 = vmatpush1.msra.mxu0 0.0
        %433 = vmatprep.subr.mxu0 0.0
        %434 = vmatpush1.msra.mxu0 0.0
        %435 = vmatprep.subr.mxu0 0.0
        %436 = vmatpush1.msra.mxu0 0.0
        %437 = vmatprep.subr.mxu0 0.0
        %438 = vmatpush1.msra.mxu0 0.0
        %439 = vmatprep.subr.mxu0 0.0
        %440 = vmatpush1.msra.mxu0 0.0
        %441 = vmatprep.subr.mxu0 0.0
        %442 = vmatpush1.msra.mxu0 0.0
        %443 = vmatprep.subr.mxu0 0.0
        %444 = vmatpush1.msra.mxu0 0.0
        %445 = vmatprep.subr.mxu0 0.0
        %446 = vmatpush1.msra.mxu0 0.0
        %447 = vmatprep.subr.mxu0 0.0
        %448 = vmatpush1.msra.mxu0 0.0
        %449 = vmatprep.subr.mxu0 0.0
        %450 = vmatpush1.msra.mxu0 0.0
        %451 = vmatprep.subr.mxu0 0.0
        %452 = vmatpush1.msra.mxu0 0.0
        %453 = vmatprep.mubr.f32.mxu0 0.0
        %454 = vmatmul.mubr.f32.gmra.mrb[0].mxu0 %v384
        %v455 = vpop.f32.mrb[0].mxu0
        %v456 = vadd.f32 %v375, %v455
        %v457 = vpop.f32.mrb[0].mxu0
        %458 = vmatprep.mubr.f32.mxu0 0.0
        %459 = vmatmul.mubr.f32.gmra.mrb[0].mxu0 %v387
        %v460 = vpop.f32.mrb[0].mxu0
        %v461 = vadd.f32 %v380, %v460
        %v462 = vpop.f32.mrb[0].mxu0
        %463 = vdwg.mxu0
        %v464 = vld [vmem:[#allocation2 + $0x2] sm:$0xff]
        %v465 = vld [vmem:[#allocation2 + $0xa] sm:$0xff]
        %s466 = scalar_lea.vmem [#allocation7], 128
        %v467 = vld [vmem:[%s466] sm:$0xff]
        %v468 = vld [vmem:[%s466 + $0x8] sm:$0xff]
        %v469 = vld [vmem:[%s466 + $0x10] sm:$0xff]
        %v470 = vld [vmem:[%s466 + $0x18] sm:$0xff]
        %v471 = vld [vmem:[%s466 + $0x20] sm:$0xff]
        %v472 = vld [vmem:[%s466 + $0x28] sm:$0xff]
        %v473 = vld [vmem:[%s466 + $0x30] sm:$0xff]
        %v474 = vld [vmem:[%s466 + $0x38] sm:$0xff]
        %v476 = vsel %vm272, %v464, 0
        %v479 = vsel %vm272, %v465, 0
        %481 = vmatprep.subr.mxu0 0.0
        %482 = vmatpush1.msra.mxu0 %v467
        %483 = vmatprep.subr.mxu0 0.0
        %484 = vmatpush1.msra.mxu0 %v468
        %485 = vmatprep.subr.mxu0 0.0
        %486 = vmatpush1.msra.mxu0 %v469
        %487 = vmatprep.subr.mxu0 0.0
        %488 = vmatpush1.msra.mxu0 %v470
        %489 = vmatprep.subr.mxu0 0.0
        %490 = vmatpush1.msra.mxu0 %v471
        %491 = vmatprep.subr.mxu0 0.0
        %492 = vmatpush1.msra.mxu0 %v472
        %493 = vmatprep.subr.mxu0 0.0
        %494 = vmatpush1.msra.mxu0 %v473
        %495 = vmatprep.subr.mxu0 0.0
        %496 = vmatpush1.msra.mxu0 %v474
        %497 = vmatprep.subr.mxu0 0.0
        %498 = vmatpush1.msra.mxu0 0.0
        %499 = vmatprep.subr.mxu0 0.0
        %500 = vmatpush1.msra.mxu0 0.0
        %501 = vmatprep.subr.mxu0 0.0
        %502 = vmatpush1.msra.mxu0 0.0
        %503 = vmatprep.subr.mxu0 0.0
        %504 = vmatpush1.msra.mxu0 0.0
        %505 = vmatprep.subr.mxu0 0.0
        %506 = vmatpush1.msra.mxu0 0.0
        %507 = vmatprep.subr.mxu0 0.0
        %508 = vmatpush1.msra.mxu0 0.0
        %509 = vmatprep.subr.mxu0 0.0
        %510 = vmatpush1.msra.mxu0 0.0
        %511 = vmatprep.subr.mxu0 0.0
        %512 = vmatpush1.msra.mxu0 0.0
        %513 = vmatprep.subr.mxu0 0.0
        %514 = vmatpush1.msra.mxu0 0.0
        %515 = vmatprep.subr.mxu0 0.0
        %516 = vmatpush1.msra.mxu0 0.0
        %517 = vmatprep.subr.mxu0 0.0
        %518 = vmatpush1.msra.mxu0 0.0
        %519 = vmatprep.subr.mxu0 0.0
        %520 = vmatpush1.msra.mxu0 0.0
        %521 = vmatprep.subr.mxu0 0.0
        %522 = vmatpush1.msra.mxu0 0.0
        %523 = vmatprep.subr.mxu0 0.0
        %524 = vmatpush1.msra.mxu0 0.0
        %525 = vmatprep.subr.mxu0 0.0
        %526 = vmatpush1.msra.mxu0 0.0
        %527 = vmatprep.subr.mxu0 0.0
        %528 = vmatpush1.msra.mxu0 0.0
        %529 = vmatprep.subr.mxu0 0.0
        %530 = vmatpush1.msra.mxu0 0.0
        %531 = vmatprep.subr.mxu0 0.0
        %532 = vmatpush1.msra.mxu0 0.0
        %533 = vmatprep.subr.mxu0 0.0
        %534 = vmatpush1.msra.mxu0 0.0
        %535 = vmatprep.subr.mxu0 0.0
        %536 = vmatpush1.msra.mxu0 0.0
        %537 = vmatprep.subr.mxu0 0.0
        %538 = vmatpush1.msra.mxu0 0.0
        %539 = vmatprep.subr.mxu0 0.0
        %540 = vmatpush1.msra.mxu0 0.0
        %541 = vmatprep.subr.mxu0 0.0
        %542 = vmatpush1.msra.mxu0 0.0
        %543 = vmatprep.subr.mxu0 0.0
        %544 = vmatpush1.msra.mxu0 0.0
        %545 = vmatprep.mubr.f32.mxu0 0.0
        %546 = vmatmul.mubr.f32.gmra.mrb[0].mxu0 %v476
        %v547 = vpop.f32.mrb[0].mxu0
        %v548 = vadd.f32 0.0, %v547
        %v549 = vpop.f32.mrb[0].mxu0
        %550 = vmatprep.mubr.f32.mxu0 0.0
        %551 = vmatmul.mubr.f32.gmra.mrb[0].mxu0 %v479
        %v552 = vpop.f32.mrb[0].mxu0
        %v553 = vadd.f32 0.0, %v552
        %v554 = vpop.f32.mrb[0].mxu0
        %555 = vdwg.mxu0
        %v556 = vadd.f32 %v456, %v548
        %v557 = vadd.f32 %v461, %v553
        %v558 = vld [vmem:[%s2] sm:$0x1]
        %v560 = vlaneseq
        %v561 = vshrl.u32 %v560, 7
        %v562 = vsub.s32 0, %v561
        %v563 = vrot.slane %v558, %v562
        %v565 = vadd.f32 %v556, %v563
        %v566 = vadd.f32 %v557, %v563
        %v567 = vmax.f32 %v565, 0.0
        %v568 = vmax.f32 %v566, 0.0
        %569 = vst [vmem:[#allocation3] sm:$0xff] 0.0
        %570 = vst [vmem:[#allocation3 + $0x8] sm:$0xff] 0.0
        %571 = vst [vmem:[#allocation3 + $0x10] sm:$0x3] 0.0
        %572 = vst [vmem:[#allocation3 + $0x1] sm:$0xff] %v567
        %573 = vst [vmem:[#allocation3 + $0x9] sm:$0xff] %v568
        %v574 = vld [vmem:[#allocation3] sm:$0xff]
        %v575 = vld [vmem:[#allocation3 + $0x8] sm:$0xff]
        %v576 = vld [vmem:[#allocation9] sm:$0xff]
        %v577 = vld [vmem:[#allocation9 + $0x8] sm:$0xff]
        %v578 = vld [vmem:[#allocation9 + $0x10] sm:$0xff]
        %v579 = vld [vmem:[#allocation9 + $0x18] sm:$0xff]
        %v580 = vld [vmem:[#allocation9 + $0x20] sm:$0xff]
        %v581 = vld [vmem:[#allocation9 + $0x28] sm:$0xff]
        %v582 = vld [vmem:[#allocation9 + $0x30] sm:$0xff]
        %v583 = vld [vmem:[#allocation9 + $0x38] sm:$0xff]
        %v584 = vld [vmem:[#allocation9 + $0x40] sm:$0xff]
        %v585 = vld [vmem:[#allocation9 + $0x48] sm:$0xff]
        %v586 = vld [vmem:[#allocation9 + $0x50] sm:$0xff]
        %v587 = vld [vmem:[#allocation9 + $0x58] sm:$0xff]
        %v588 = vld [vmem:[#allocation9 + $0x60] sm:$0xff]
        %v589 = vld [vmem:[#allocation9 + $0x68] sm:$0xff]
        %v590 = vld [vmem:[#allocation9 + $0x70] sm:$0xff]
        %v591 = vld [vmem:[#allocation9 + $0x78] sm:$0xff]
        %v592 = vld [vmem:[#allocation3 + $0x1] sm:$0xff]
        %v593 = vld [vmem:[#allocation3 + $0x9] sm:$0xff]
        %s594 = scalar_lea.vmem [#allocation9], 128
        %v595 = vld [vmem:[%s594] sm:$0xff]
        %v596 = vld [vmem:[%s594 + $0x8] sm:$0xff]
        %v597 = vld [vmem:[%s594 + $0x10] sm:$0xff]
        %v598 = vld [vmem:[%s594 + $0x18] sm:$0xff]
        %v599 = vld [vmem:[%s594 + $0x20] sm:$0xff]
        %v600 = vld [vmem:[%s594 + $0x28] sm:$0xff]
        %v601 = vld [vmem:[%s594 + $0x30] sm:$0xff]
        %v602 = vld [vmem:[%s594 + $0x38] sm:$0xff]
        %v603 = vld [vmem:[%s594 + $0x40] sm:$0xff]
        %v604 = vld [vmem:[%s594 + $0x48] sm:$0xff]
        %v605 = vld [vmem:[%s594 + $0x50] sm:$0xff]
        %v606 = vld [vmem:[%s594 + $0x58] sm:$0xff]
        %v607 = vld [vmem:[%s594 + $0x60] sm:$0xff]
        %v608 = vld [vmem:[%s594 + $0x68] sm:$0xff]
        %v609 = vld [vmem:[%s594 + $0x70] sm:$0xff]
        %v610 = vld [vmem:[%s594 + $0x78] sm:$0xff]
        %611 = vmatprep.subr.mxu0 0.0
        %612 = vmatpush1.msra.mxu0 %v595
        %613 = vmatprep.subr.mxu0 0.0
        %614 = vmatpush1.msra.mxu0 %v596
        %615 = vmatprep.subr.mxu0 0.0
        %616 = vmatpush1.msra.mxu0 %v597
        %617 = vmatprep.subr.mxu0 0.0
        %618 = vmatpush1.msra.mxu0 %v598
        %619 = vmatprep.subr.mxu0 0.0
        %620 = vmatpush1.msra.mxu0 %v599
        %621 = vmatprep.subr.mxu0 0.0
        %622 = vmatpush1.msra.mxu0 %v600
        %623 = vmatprep.subr.mxu0 0.0
        %624 = vmatpush1.msra.mxu0 %v601
        %625 = vmatprep.subr.mxu0 0.0
        %626 = vmatpush1.msra.mxu0 %v602
        %627 = vmatprep.subr.mxu0 0.0
        %628 = vmatpush1.msra.mxu0 %v603
        %629 = vmatprep.subr.mxu0 0.0
        %630 = vmatpush1.msra.mxu0 %v604
        %631 = vmatprep.subr.mxu0 0.0
        %632 = vmatpush1.msra.mxu0 %v605
        %633 = vmatprep.subr.mxu0 0.0
        %634 = vmatpush1.msra.mxu0 %v606
        %635 = vmatprep.subr.mxu0 0.0
        %636 = vmatpush1.msra.mxu0 %v607
        %637 = vmatprep.subr.mxu0 0.0
        %638 = vmatpush1.msra.mxu0 %v608
        %639 = vmatprep.subr.mxu0 0.0
        %640 = vmatpush1.msra.mxu0 %v609
        %641 = vmatprep.subr.mxu0 0.0
        %642 = vmatpush1.msra.mxu0 %v610
        %643 = vmatprep.subr.mxu0 0.0
        %644 = vmatpush1.msra.mxu0 0.0
        %645 = vmatprep.subr.mxu0 0.0
        %646 = vmatpush1.msra.mxu0 0.0
        %647 = vmatprep.subr.mxu0 0.0
        %648 = vmatpush1.msra.mxu0 0.0
        %649 = vmatprep.subr.mxu0 0.0
        %650 = vmatpush1.msra.mxu0 0.0
        %651 = vmatprep.subr.mxu0 0.0
        %652 = vmatpush1.msra.mxu0 0.0
        %653 = vmatprep.subr.mxu0 0.0
        %654 = vmatpush1.msra.mxu0 0.0
        %655 = vmatprep.subr.mxu0 0.0
        %656 = vmatpush1.msra.mxu0 0.0
        %657 = vmatprep.subr.mxu0 0.0
        %658 = vmatpush1.msra.mxu0 0.0
        %659 = vmatprep.subr.mxu0 0.0
        %660 = vmatpush1.msra.mxu0 0.0
        %661 = vmatprep.subr.mxu0 0.0
        %662 = vmatpush1.msra.mxu0 0.0
        %663 = vmatprep.subr.mxu0 0.0
        %664 = vmatpush1.msra.mxu0 0.0
        %665 = vmatprep.subr.mxu0 0.0
        %666 = vmatpush1.msra.mxu0 0.0
        %667 = vmatprep.subr.mxu0 0.0
        %668 = vmatpush1.msra.mxu0 0.0
        %669 = vmatprep.subr.mxu0 0.0
        %670 = vmatpush1.msra.mxu0 0.0
        %671 = vmatprep.subr.mxu0 0.0
        %672 = vmatpush1.msra.mxu0 0.0
        %673 = vmatprep.subr.mxu0 0.0
        %674 = vmatpush1.msra.mxu0 0.0
        %675 = vmatprep.mubr.f32.mxu0 0.0
        %676 = vmatmul.mubr.f32.gmra.mrb[0].mxu0 %v592
        %v677 = vpop.f32.mrb[0].mxu0
        %v678 = vadd.f32 0.0, %v677
        %v679 = vpop.f32.mrb[0].mxu0
        %680 = vmatprep.mubr.f32.mxu0 0.0
        %681 = vmatmul.mubr.f32.gmra.mrb[0].mxu0 %v593
        %v682 = vpop.f32.mrb[0].mxu0
        %v683 = vadd.f32 0.0, %v682
        %v684 = vpop.f32.mrb[0].mxu0
        %685 = vdwg.mxu0
        %686 = vmatprep.subr.mxu0 0.0
        %687 = vmatpush1.msra.mxu0 %v576
        %688 = vmatprep.subr.mxu0 0.0
        %689 = vmatpush1.msra.mxu0 %v577
        %690 = vmatprep.subr.mxu0 0.0
        %691 = vmatpush1.msra.mxu0 %v578
        %692 = vmatprep.subr.mxu0 0.0
        %693 = vmatpush1.msra.mxu0 %v579
        %694 = vmatprep.subr.mxu0 0.0
        %695 = vmatpush1.msra.mxu0 %v580
        %696 = vmatprep.subr.mxu0 0.0
        %697 = vmatpush1.msra.mxu0 %v581
        %698 = vmatprep.subr.mxu0 0.0
        %699 = vmatpush1.msra.mxu0 %v582
        %700 = vmatprep.subr.mxu0 0.0
        %701 = vmatpush1.msra.mxu0 %v583
        %702 = vmatprep.subr.mxu0 0.0
        %703 = vmatpush1.msra.mxu0 %v584
        %704 = vmatprep.subr.mxu0 0.0
        %705 = vmatpush1.msra.mxu0 %v585
        %706 = vmatprep.subr.mxu0 0.0
        %707 = vmatpush1.msra.mxu0 %v586
        %708 = vmatprep.subr.mxu0 0.0
        %709 = vmatpush1.msra.mxu0 %v587
        %710 = vmatprep.subr.mxu0 0.0
        %711 = vmatpush1.msra.mxu0 %v588
        %712 = vmatprep.subr.mxu0 0.0
        %713 = vmatpush1.msra.mxu0 %v589
        %714 = vmatprep.subr.mxu0 0.0
        %715 = vmatpush1.msra.mxu0 %v590
        %716 = vmatprep.subr.mxu0 0.0
        %717 = vmatpush1.msra.mxu0 %v591
        %718 = vmatprep.subr.mxu0 0.0
        %719 = vmatpush1.msra.mxu0 0.0
        %720 = vmatprep.subr.mxu0 0.0
        %721 = vmatpush1.msra.mxu0 0.0
        %722 = vmatprep.subr.mxu0 0.0
        %723 = vmatpush1.msra.mxu0 0.0
        %724 = vmatprep.subr.mxu0 0.0
        %725 = vmatpush1.msra.mxu0 0.0
        %726 = vmatprep.subr.mxu0 0.0
        %727 = vmatpush1.msra.mxu0 0.0
        %728 = vmatprep.subr.mxu0 0.0
        %729 = vmatpush1.msra.mxu0 0.0
        %730 = vmatprep.subr.mxu0 0.0
        %731 = vmatpush1.msra.mxu0 0.0
        %732 = vmatprep.subr.mxu0 0.0
        %733 = vmatpush1.msra.mxu0 0.0
        %734 = vmatprep.subr.mxu0 0.0
        %735 = vmatpush1.msra.mxu0 0.0
        %736 = vmatprep.subr.mxu0 0.0
        %737 = vmatpush1.msra.mxu0 0.0
        %738 = vmatprep.subr.mxu0 0.0
        %739 = vmatpush1.msra.mxu0 0.0
        %740 = vmatprep.subr.mxu0 0.0
        %741 = vmatpush1.msra.mxu0 0.0
        %742 = vmatprep.subr.mxu0 0.0
        %743 = vmatpush1.msra.mxu0 0.0
        %744 = vmatprep.subr.mxu0 0.0
        %745 = vmatpush1.msra.mxu0 0.0
        %746 = vmatprep.subr.mxu0 0.0
        %747 = vmatpush1.msra.mxu0 0.0
        %748 = vmatprep.subr.mxu0 0.0
        %749 = vmatpush1.msra.mxu0 0.0
        %750 = vmatprep.mubr.f32.mxu0 0.0
        %751 = vmatmul.mubr.f32.gmra.mrb[0].mxu0 %v574
        %v752 = vpop.f32.mrb[0].mxu0
        %v753 = vadd.f32 %v678, %v752
        %v754 = vpop.f32.mrb[0].mxu0
        %755 = vmatprep.mubr.f32.mxu0 0.0
        %756 = vmatmul.mubr.f32.gmra.mrb[0].mxu0 %v575
        %v757 = vpop.f32.mrb[0].mxu0
        %v758 = vadd.f32 %v683, %v757
        %v759 = vpop.f32.mrb[0].mxu0
        %760 = vdwg.mxu0
        %v761 = vld [vmem:[#allocation3 + $0x2] sm:$0xff]
        %v762 = vld [vmem:[#allocation3 + $0xa] sm:$0xff]
        %s763 = scalar_lea.vmem [#allocation9], 256
        %v764 = vld [vmem:[%s763] sm:$0xff]
        %v765 = vld [vmem:[%s763 + $0x8] sm:$0xff]
        %v766 = vld [vmem:[%s763 + $0x10] sm:$0xff]
        %v767 = vld [vmem:[%s763 + $0x18] sm:$0xff]
        %v768 = vld [vmem:[%s763 + $0x20] sm:$0xff]
        %v769 = vld [vmem:[%s763 + $0x28] sm:$0xff]
        %v770 = vld [vmem:[%s763 + $0x30] sm:$0xff]
        %v771 = vld [vmem:[%s763 + $0x38] sm:$0xff]
        %v772 = vld [vmem:[%s763 + $0x40] sm:$0xff]
        %v773 = vld [vmem:[%s763 + $0x48] sm:$0xff]
        %v774 = vld [vmem:[%s763 + $0x50] sm:$0xff]
        %v775 = vld [vmem:[%s763 + $0x58] sm:$0xff]
        %v776 = vld [vmem:[%s763 + $0x60] sm:$0xff]
        %v777 = vld [vmem:[%s763 + $0x68] sm:$0xff]
        %v778 = vld [vmem:[%s763 + $0x70] sm:$0xff]
        %v779 = vld [vmem:[%s763 + $0x78] sm:$0xff]
        %780 = vmatprep.subr.mxu0 0.0
        %781 = vmatpush1.msra.mxu0 %v764
        %782 = vmatprep.subr.mxu0 0.0
        %783 = vmatpush1.msra.mxu0 %v765
        %784 = vmatprep.subr.mxu0 0.0
        %785 = vmatpush1.msra.mxu0 %v766
        %786 = vmatprep.subr.mxu0 0.0
        %787 = vmatpush1.msra.mxu0 %v767
        %788 = vmatprep.subr.mxu0 0.0
        %789 = vmatpush1.msra.mxu0 %v768
        %790 = vmatprep.subr.mxu0 0.0
        %791 = vmatpush1.msra.mxu0 %v769
        %792 = vmatprep.subr.mxu0 0.0
        %793 = vmatpush1.msra.mxu0 %v770
        %794 = vmatprep.subr.mxu0 0.0
        %795 = vmatpush1.msra.mxu0 %v771
        %796 = vmatprep.subr.mxu0 0.0
        %797 = vmatpush1.msra.mxu0 %v772
        %798 = vmatprep.subr.mxu0 0.0
        %799 = vmatpush1.msra.mxu0 %v773
        %800 = vmatprep.subr.mxu0 0.0
        %801 = vmatpush1.msra.mxu0 %v774
        %802 = vmatprep.subr.mxu0 0.0
        %803 = vmatpush1.msra.mxu0 %v775
        %804 = vmatprep.subr.mxu0 0.0
        %805 = vmatpush1.msra.mxu0 %v776
        %806 = vmatprep.subr.mxu0 0.0
        %807 = vmatpush1.msra.mxu0 %v777
        %808 = vmatprep.subr.mxu0 0.0
        %809 = vmatpush1.msra.mxu0 %v778
        %810 = vmatprep.subr.mxu0 0.0
        %811 = vmatpush1.msra.mxu0 %v779
        %812 = vmatprep.subr.mxu0 0.0
        %813 = vmatpush1.msra.mxu0 0.0
        %814 = vmatprep.subr.mxu0 0.0
        %815 = vmatpush1.msra.mxu0 0.0
        %816 = vmatprep.subr.mxu0 0.0
        %817 = vmatpush1.msra.mxu0 0.0
        %818 = vmatprep.subr.mxu0 0.0
        %819 = vmatpush1.msra.mxu0 0.0
        %820 = vmatprep.subr.mxu0 0.0
        %821 = vmatpush1.msra.mxu0 0.0
        %822 = vmatprep.subr.mxu0 0.0
        %823 = vmatpush1.msra.mxu0 0.0
        %824 = vmatprep.subr.mxu0 0.0
        %825 = vmatpush1.msra.mxu0 0.0
        %826 = vmatprep.subr.mxu0 0.0
        %827 = vmatpush1.msra.mxu0 0.0
        %828 = vmatprep.subr.mxu0 0.0
        %829 = vmatpush1.msra.mxu0 0.0
        %830 = vmatprep.subr.mxu0 0.0
        %831 = vmatpush1.msra.mxu0 0.0
        %832 = vmatprep.subr.mxu0 0.0
        %833 = vmatpush1.msra.mxu0 0.0
        %834 = vmatprep.subr.mxu0 0.0
        %835 = vmatpush1.msra.mxu0 0.0
        %836 = vmatprep.subr.mxu0 0.0
        %837 = vmatpush1.msra.mxu0 0.0
        %838 = vmatprep.subr.mxu0 0.0
        %839 = vmatpush1.msra.mxu0 0.0
        %840 = vmatprep.subr.mxu0 0.0
        %841 = vmatpush1.msra.mxu0 0.0
        %842 = vmatprep.subr.mxu0 0.0
        %843 = vmatpush1.msra.mxu0 0.0
        %844 = vmatprep.mubr.f32.mxu0 0.0
        %845 = vmatmul.mubr.f32.gmra.mrb[0].mxu0 %v761
        %v846 = vpop.f32.mrb[0].mxu0
        %v847 = vadd.f32 0.0, %v846
        %v848 = vpop.f32.mrb[0].mxu0
        %849 = vmatprep.mubr.f32.mxu0 0.0
        %850 = vmatmul.mubr.f32.gmra.mrb[0].mxu0 %v762
        %v851 = vpop.f32.mrb[0].mxu0
        %v852 = vadd.f32 0.0, %v851
        %v853 = vpop.f32.mrb[0].mxu0
        %854 = vdwg.mxu0
        %v855 = vadd.f32 %v753, %v847
        %v856 = vadd.f32 %v758, %v852
        %v857 = vld [vmem:[%s4] sm:$0x1]
        %v859 = vlaneseq
        %v860 = vshrl.u32 %v859, 7
        %v861 = vsub.s32 0, %v860
        %v862 = vrot.slane %v857, %v861
        %v864 = vadd.f32 %v855, %v862
        %v865 = vadd.f32 %v856, %v862
        %v866 = vmax.f32 %v864, 0.0
        %v867 = vmax.f32 %v865, 0.0
        %868 = vst [vmem:[%s271] sm:$0xff] %v866
        %869 = vst [vmem:[%s271 + $0x8] sm:$0xff] %v867
        %s870 = sand.u32 %s141, 1
        %s871 = scalar_lea.sflag [#allocation6], %s870
        %s872 = sand.u32 %s141, 1
        %s873 = smul.addr %s872, 16
        %s874 = scalar_lea.vmem [#allocation10], %s873
        // Predicated region
        $region53: #{tpu_custom_call.1} parent=39 // pred_check
          %p875 = pneg %p151
        $region54: #{tpu_custom_call.1} parent=39 // pred_check_branch
          %877 = sbr.rel (%p875) target = $region56
        $region55: #{tpu_custom_call.1} parent=39 // pred_region
          %s879 = ssub.s32 256, 256
          %880 = vsyncadd %s871, %s879
          %s881 = smul.addr %s23, 2
          %s882 = smul.addr %s881, 128
          %s883 = scalar_lea.hbm %s5, %s882
          %s884 = sshll.u32 %s874, 4
          %s885 = int_to_ptr.vmem [resolvable:$true] %s884
          %890 = dma.vmem_to_hbm [thread:$0]  %s885, 256, %s883, %s871, 128, 128, 8
        $region56: #{tpu_custom_call.1} parent=39 // pred_fallthru
          _
      $region40: #{tpu_custom_call.1} parent=5 // pred_fallthru
        _
      %p891 = scmp.le.s32.totalorder 2, %s18
      // Predicated region
      $region57: #{tpu_custom_call.1} parent=5 // pred_check
        %p892 = pneg %p891
      $region58: #{tpu_custom_call.1} parent=5 // pred_check_branch
        %894 = sbr.rel (%p892) target = $region60
      $region59: #{tpu_custom_call.1} parent=5 // pred_region
        %s895 = ssub.s32 %s18, 2
        // Predicated region
        $region61: #{tpu_custom_call.1} parent=59 // pred_check
          %p896 = pneg %p157
        $region62: #{tpu_custom_call.1} parent=59 // pred_check_branch
          %898 = sbr.rel (%p896) target = $region64
        $region63: #{tpu_custom_call.1} parent=59 // pred_region
          %s899 = sand.u32 %s142, 1
          %s900 = scalar_lea.sflag [#allocation6], %s899
          %s901 = sand.u32 %s142, 1
          %s902 = smul.addr %s901, 16
          %s903 = scalar_lea.vmem [#allocation10], %s902
          %904 = dma.done %s900, 256
        $region64: #{tpu_custom_call.1} parent=59 // pred_fallthru
          _
      $region60: #{tpu_custom_call.1} parent=5 // pred_fallthru
        _
    $region6: #{tpu_custom_call.1} parent=1 // loop_footer
      %s22 = sadd.s32 1, %s18
    $region7: #{tpu_custom_call.1} parent=1 // loop_footer_branch
      %17 = sbr.rel target = $region3
    $region8: #{tpu_custom_call.1} parent=1 // loop_exit
      _
    %905 = vsyncpa [#allocation5], 1
    %s906 = scalar_lea.sflag [#allocation5], 1
    %907 = vsyncpa %s906, 1
    %908 = vsyncpa [#allocation8], 1
    %909 = vsyncpa [#allocation6], 1
    %s910 = scalar_lea.sflag [#allocation6], 1
    %911 = vsyncpa %s910, 1

</llo_original>
